<compile_context>
chip_gen: v6e
topology: v6e:2x2x1
jax: 0.10.0
libtpu: 0.0.40
codegen_flags: <defaults>
</compile_context>

<pallas_src>
import math
import jax
import jax.numpy as jnp
from jax.experimental import pallas as pl
from jax.experimental.pallas import tpu as pltpu


def _make_pe(d_model: int, max_len: int) -> jnp.ndarray:
    """Deterministic sinusoidal positional-encoding buffer [max_len, d_model]."""
    position = jnp.arange(max_len, dtype=jnp.float32)[:, None]
    div_term = jnp.exp(jnp.arange(0, d_model, 2, dtype=jnp.float32)
                       * (-math.log(10000.0) / d_model))
    pe = jnp.zeros((max_len, d_model), dtype=jnp.float32)
    pe = pe.at[:, 0::2].set(jnp.sin(position * div_term))
    pe = pe.at[:, 1::2].set(jnp.cos(position * div_term))
    return pe


def _round_up(x: int, m: int) -> int:
    return ((x + m - 1) // m) * m


def _sublane_rows(dtype) -> int:
    # Native sublane packing: 8 rows for 4-byte, 16 for 2-byte, 32 for 1-byte dtypes.
    return {4: 8, 2: 16, 1: 32}.get(jnp.dtype(dtype).itemsize, 8)


def _add_pe_kernel(x_ref, pe_ref, o_ref):
    # x block: [TS, TB]; pe block: [1, TB] -> broadcasts over rows.
    # Add in f32 (pe is an f32 buffer), then cast to the promoted output dtype.
    acc = x_ref[...].astype(jnp.float32) + pe_ref[...].astype(jnp.float32)
    o_ref[...] = acc.astype(o_ref.dtype)


def _choose_tiles(S: int, BD: int, elem_bytes: int, sublane: int,
                  target_tile_bytes: int, min_grid_s: int = 2):
    """Pick (TS, TB) block dims for the flattened (S, BD) layout."""
    row_bytes = BD * elem_bytes
    if row_bytes <= target_tile_bytes:
        # Whole row in one lane-dense block (full-dim block: legal even if BD%128 != 0).
        TB = BD
    else:
        # Row too large: split BD with a wide multiple-of-128 block so stores stay
        # unmasked everywhere except the single edge block.
        TB = (target_tile_bytes // (sublane * elem_bytes) // 128) * 128
        TB = max(128, min(TB, _round_up(BD, 128)))

    TS = (target_tile_bytes // max(1, TB * elem_bytes)) // sublane * sublane
    TS = max(sublane, TS)
    if TS >= S:
        # Cap so the S axis still produces >= min_grid_s steps: lets the grid shard
        # across both TensorCores on v7x and keeps the pipeline busy.
        TS = min(S, _round_up(pl.cdiv(S, min_grid_s), sublane))
    else:
        # Prefer a TS that divides S exactly (avoid a mostly-masked final tile).
        for cand in range(TS, max(sublane, TS // 2) - 1, -sublane):
            if S % cand == 0:
                TS = cand
                break
    return TS, TB


def positional_encoding_forward(x: jnp.ndarray, pe_buffer: jnp.ndarray,
                                *, target_tile_bytes: int = 4 * 1024 * 1024) -> jnp.ndarray:
    """x: [S, B, D], pe_buffer: [max_len, D] -> x + pe_buffer[:B][None] (reference slices by batch)."""
    S, B, D = x.shape
    assert B <= pe_buffer.shape[0], "batch dim must be <= max_len (reference slices pe[:B])"

    out_dtype = jnp.result_type(x.dtype, pe_buffer.dtype)    # PyTorch-style promotion
    BD = B * D

    # Lane-dense layout: (S, B, D) -> (S, B*D); contiguous reshape, effectively free.
    x2 = x.reshape(S, BD)
    pe2 = pe_buffer[:B].reshape(1, BD)                        # kept in f32; add done in f32

    elem_bytes = max(jnp.dtype(x.dtype).itemsize, jnp.dtype(out_dtype).itemsize)
    sublane = _sublane_rows(x.dtype)
    TS, TB = _choose_tiles(S, BD, elem_bytes, sublane, target_tile_bytes)

    grid = (pl.cdiv(S, TS), pl.cdiv(BD, TB))

    # pe is grid-invariant when the BD axis is unsplit; single-buffer it then
    # (frees one TB-wide VMEM buffer), but only once the saving actually matters.
    pe_kwargs = {}
    if grid[1] == 1 and TB * jnp.dtype(pe2.dtype).itemsize >= (1 << 20):
        pe_kwargs["pipeline_mode"] = pl.Buffered(1)

    x_bytes = jnp.dtype(x.dtype).itemsize
    out_bytes = jnp.dtype(out_dtype).itemsize
    pe_bytes = jnp.dtype(pe2.dtype).itemsize
    cost = pl.CostEstimate(
        flops=S * BD,
        transcendentals=0,
        bytes_accessed=S * BD * (x_bytes + out_bytes) + BD * pe_bytes,
    )

    out = pl.pallas_call(
        _add_pe_kernel,
        out_shape=jax.ShapeDtypeStruct((S, BD), out_dtype),
        grid=grid,
        in_specs=[
            pl.BlockSpec((TS, TB), lambda s, c: (s, c)),           # x tile marches over both axes
            pl.BlockSpec((1, TB), lambda s, c: (0, c), **pe_kwargs),  # pe: constant along S
        ],
        out_specs=pl.BlockSpec((TS, TB), lambda s, c: (s, c)),
        compiler_params=pltpu.CompilerParams(
            dimension_semantics=("parallel", "parallel"),          # megacore sharding on v7x
            vmem_limit_bytes=32 * 1024 * 1024,                     # 2x in + 2x out tiles + pe + slack
        ),
        cost_estimate=cost,
    )(x2, pe2)

    return out.reshape(S, B, D)


if __name__ == "__main__":
    d_model = 32
    max_len = 16
    seq_len = 8
    batch = 4  # must be <= max_len, since pe is sliced by the batch dim in the reference

    key = jax.random.PRNGKey(0)
    x = jax.random.normal(key, (seq_len, batch, d_model), dtype=jnp.float32)

    pe_buffer = _make_pe(d_model, max_len)

    out = positional_encoding_forward(x, pe_buffer)
    out = jax.block_until_ready(out)

    # Reference check in plain JAX (same semantics as the PyTorch module).
    ref = x + pe_buffer[:batch][None, :, :]
    assert out.shape == ref.shape and out.dtype == ref.dtype
    assert jnp.allclose(out, ref, atol=1e-6), "mismatch vs reference"

    print("KERNEL_OK")
</pallas_src>

<mosaic_0001>
module attributes {stable_mosaic.version = 11 : i64} {
  func.func @_add_pe_kernel(%arg0: i32, %arg1: i32, %arg2: memref<8x128xf32, #tpu.memory_space<vmem>>, %arg3: memref<1x128xf32, #tpu.memory_space<vmem>>, %arg4: memref<8x128xf32, #tpu.memory_space<vmem>>) attributes {dimension_semantics = [#tpu.dimension_semantics<parallel>, #tpu.dimension_semantics<parallel>], iteration_bounds = array<i64: 1, 1>, scalar_prefetch = 0 : i64, scratch_operands = 0 : i64, tpu.core_type = #tpu.core_type<tc>, window_params = [{transform_indices = @transform_0, window_bounds = array<i64: 8, 128>}, {transform_indices = @transform_1, window_bounds = array<i64: 1, 128>}, {transform_indices = @transform_2, window_bounds = array<i64: 8, 128>}]} {
    %c0 = arith.constant 0 : index
    %c0_0 = arith.constant 0 : index
    %0 = vector.load %arg2[%c0, %c0_0] : memref<8x128xf32, #tpu.memory_space<vmem>>, vector<8x128xf32>
    %c0_1 = arith.constant 0 : index
    %c0_2 = arith.constant 0 : index
    %1 = vector.load %arg3[%c0_1, %c0_2] : memref<1x128xf32, #tpu.memory_space<vmem>>, vector<1x128xf32>
    %2 = vector.broadcast %1 : vector<1x128xf32> to vector<8x128xf32>
    %3 = arith.addf %0, %2 : vector<8x128xf32>
    %c0_3 = arith.constant 0 : index
    %c0_4 = arith.constant 0 : index
    %4 = vector.load %arg4[%c0_3, %c0_4] : memref<8x128xf32, #tpu.memory_space<vmem>>, vector<8x128xf32>
    tpu.vector_store %arg4[%c0_3, %c0_4], %3 {strides = array<i32>} : memref<8x128xf32, #tpu.memory_space<vmem>>, vector<8x128xf32>,
    return
  }
  func.func @transform_0(%arg0: i32, %arg1: i32) -> (i32, i32) {
    %c0_i32 = arith.constant 0 : i32
    return %arg0, %arg1 : i32, i32
  }
  func.func @transform_1(%arg0: i32, %arg1: i32) -> (i32, i32) {
    %c0_i32 = arith.constant 0 : i32
    %c0_i32_0 = arith.constant 0 : i32
    return %c0_i32, %arg1 : i32, i32
  }
  func.func @transform_2(%arg0: i32, %arg1: i32) -> (i32, i32) {
    %c0_i32 = arith.constant 0 : i32
    return %arg0, %arg1 : i32, i32
  }
}

</mosaic_0001>

<llo_original>
// kernel: tpu_custom_call.1
$region0: #{tpu_custom_call.1}
  #allocation0 [shape = 'u32[]', space=smem, size = 0x4, offset = 0x4, fixed_abs, tag = 'smem constant byte address 0x4 - core index']
  #allocation1 [shape = 'u32[144,128]{1,0:T(1,128)}', space=vmem, size = 0x12000, scoped, tag = 'internal scratch']
  %s0 = inlined_call_operand.hbm [shape: f32[8,128], index: 0, kind: input, shape index: {}]
  %s1 = inlined_call_operand.vmem [shape: f32[1,128], index: 1, kind: input, shape index: {}]
  %s2 = inlined_call_operand.hbm [shape: f32[8,128], index: 2, kind: output, shape index: {}]
  %s3 = sld [smem:[#allocation0]]
  $region22: #{tpu_custom_call.1} parent=0
    _
  %s5 = ssub.s32 1, %s3
  %s6 = scalar_select 0, %s5, %s3
  $region1: #{tpu_custom_call.1} parent=0
    #allocation2 [shape = 'u8[4096]{0}', space=vmem, size = 0x1000, scoped, tag = 'input window, operand 0, single buffered']
    #allocation3 [shape = 's32[1]{0}', space=sflag, size = 0x4, scoped, tag = 'scoped memory for tpu_custom_call.1']
    #allocation4 [shape = 's32[1]{0}', space=sflag, size = 0x4, scoped, tag = 'scoped memory for tpu_custom_call.1']
    #allocation5 [shape = 'u8[4096]{0}', space=vmem, size = 0x1000, scoped, tag = 'output window, operand 0, single buffered']
    %7 = vsyncpa [#allocation3], 0
    %8 = vsyncpa [#allocation4], 0
    // Predicated region
    $region2: #{tpu_custom_call.1} parent=1 // pred_check
      _
    $region3: #{tpu_custom_call.1} parent=1 // pred_check_branch
      %10 = sbr.rel (0) target = $region5
    $region4: #{tpu_custom_call.1} parent=1 // pred_region
      %s12 = ssub.s32 128, 128
      %13 = vsyncadd [#allocation3], %s12
      %s15 = sshll.u32 [#allocation2], 4
      %s16 = int_to_ptr.vmem [resolvable:$true] %s15
      %18 = dma.hbm_to_vmem [thread:$0]  %s0, 128, %s16, [#allocation3]
    $region5: #{tpu_custom_call.1} parent=1 // pred_fallthru
      _
    // Predicated region
    $region6: #{tpu_custom_call.1} parent=1 // pred_check
      _
    $region7: #{tpu_custom_call.1} parent=1 // pred_check_branch
      %20 = sbr.rel (0) target = $region9
    $region8: #{tpu_custom_call.1} parent=1 // pred_region
      _
    $region9: #{tpu_custom_call.1} parent=1 // pred_fallthru
      _
    // Predicated region
    $region10: #{tpu_custom_call.1} parent=1 // pred_check
      _
    $region11: #{tpu_custom_call.1} parent=1 // pred_check_branch
      %22 = sbr.rel (0) target = $region13
    $region12: #{tpu_custom_call.1} parent=1 // pred_region
      %23 = dma.done [#allocation3], 128
    $region13: #{tpu_custom_call.1} parent=1 // pred_fallthru
      _
    %v24 = vld [vmem:[#allocation2] sm:$0xff]
    %v25 = vld [vmem:[%s1] sm:$0x1]
    %v27 = vlaneseq
    %v28 = vshrl.u32 %v27, 7
    %v29 = vsub.s32 0, %v28
    %v30 = vrot.slane %v25, %v29
    %v32 = vadd.f32 %v24, %v30
    %33 = vst [vmem:[#allocation5] sm:$0xff] %v32
    // Predicated region
    $region14: #{tpu_custom_call.1} parent=1 // pred_check
      _
    $region15: #{tpu_custom_call.1} parent=1 // pred_check_branch
      %35 = sbr.rel (0) target = $region17
    $region16: #{tpu_custom_call.1} parent=1 // pred_region
      %s37 = ssub.s32 128, 128
      %38 = vsyncadd [#allocation4], %s37
      %s40 = sshll.u32 [#allocation5], 4
      %s41 = int_to_ptr.vmem [resolvable:$true] %s40
      %43 = dma.vmem_to_hbm [thread:$0]  %s41, 128, %s2, [#allocation4]
    $region17: #{tpu_custom_call.1} parent=1 // pred_fallthru
      _
    // Predicated region
    $region18: #{tpu_custom_call.1} parent=1 // pred_check
      _
    $region19: #{tpu_custom_call.1} parent=1 // pred_check_branch
      %45 = sbr.rel (0) target = $region21
    $region20: #{tpu_custom_call.1} parent=1 // pred_region
      %46 = dma.done [#allocation4], 128
    $region21: #{tpu_custom_call.1} parent=1 // pred_fallthru
      _
    %47 = vsyncpa [#allocation3], 1
    %48 = vsyncpa [#allocation4], 1

</llo_original>
